<compile_context>
chip_gen: v5e
topology: v5e:2x2
jax: 0.10.0
libtpu: 0.0.40
codegen_flags: <defaults>
</compile_context>

<pallas_src>
import jax
import jax.numpy as jnp
from jax import lax
from jax.experimental import pallas as pl
from jax.experimental.pallas import tpu as pltpu

HIDDEN_1 = 512
HIDDEN_2 = 256


def q_mlp_kernel(xa_ref, w1_ref, b1_ref, w2_ref, b2_ref, w3_ref, b3_ref, o_ref):
    # Layer 1 (fused concat already done in wrapper):
    #   (TB, inputs+actions) @ (inputs+actions, 512)  -> relu   (bf16 ops, f32 acc)
    h1 = jnp.dot(xa_ref[...], w1_ref[...], preferred_element_type=jnp.float32)
    h1 = jnp.maximum(h1 + b1_ref[...], 0.0)

    # Layer 2: (TB, 512) @ (512, 256) -> relu
    h2 = jnp.dot(h1.astype(jnp.bfloat16), w2_ref[...],
                 preferred_element_type=jnp.float32)
    h2 = jnp.maximum(h2 + b2_ref[...], 0.0)

    # Output layer, lane-dense: (1, 256) x (TB, 256)^T -> (1, TB)
    q = lax.dot_general(w3_ref[...], h2.astype(jnp.bfloat16),
                        dimension_numbers=(((1,), (1,)), ((), ())),
                        preferred_element_type=jnp.float32)
    # b3 is a scalar kept in SMEM.
    o_ref[...] = (q + b3_ref[0, 0]).astype(o_ref.dtype)


def _round_up(n, m):
    return ((n + m - 1) // m) * m


def _choose_tile(batch):
    """Pick the batch-tile size.

    * bf16 rows pack 16/sublane-group, so tiles are multiples of 16.
    * B <= 256: one tile of round_up(B, 16) rows (minimal padding waste).
    * B  > 256: tiles are multiples of 128 (keeps the lane-dense (1, TB) output
      blocks legal/unmasked), capped at 1024 rows, and chosen so the grid has
      >= 2 steps so both v7x TensorCores get work (harmless on v5e/v6e).
    """
    b16 = max(16, _round_up(batch, 16))
    if b16 <= 256:
        return b16
    return min(1024, _round_up(pl.cdiv(b16, 2), 128))


def q_forward(x, a, kparams):
    """x: (B, inputs) f32; a: (actions, B, 1) f32 (torch a[i] is (B, 1))."""
    B, inputs = x.shape
    actions = a.shape[0]
    feat = inputs + actions

    # torch does cat((x, a[0]), 1), cat((., a[1]), 1), ... -> columns a0..a_{n-1}.
    a_flat = jnp.swapaxes(a, 0, 1)[..., 0]          # (B, actions)
    xa = jnp.concatenate([x, a_flat], axis=1)       # (B, inputs+actions)

    tb = _choose_tile(B)
    b_pad = pl.cdiv(B, tb) * tb
    if b_pad != B:
        xa = jnp.pad(xa, ((0, b_pad - B), (0, 0)))
    xa_bf = xa.astype(jnp.bfloat16)

    weight_spec = lambda shape: pl.BlockSpec(shape, lambda i: (0, 0))

    flops = 2 * b_pad * (feat * HIDDEN_1 + HIDDEN_1 * HIDDEN_2 + HIDDEN_2)
    weight_bytes = (2 * (feat * HIDDEN_1 + HIDDEN_1 * HIDDEN_2 + HIDDEN_2)
                    + 4 * (HIDDEN_1 + HIDDEN_2 + 1))
    bytes_accessed = weight_bytes + 2 * b_pad * feat + 4 * b_pad

    out_row = pl.pallas_call(
        q_mlp_kernel,
        out_shape=jax.ShapeDtypeStruct((1, b_pad), jnp.float32),
        grid_spec=pltpu.PrefetchScalarGridSpec(
            num_scalar_prefetch=0,
            grid=(b_pad // tb,),
            in_specs=[
                pl.BlockSpec((tb, feat), lambda i: (i, 0)),       # fused [x|a] tile
                weight_spec((feat, HIDDEN_1)),                    # w1 (VMEM-resident)
                weight_spec((1, HIDDEN_1)),                       # b1
                weight_spec((HIDDEN_1, HIDDEN_2)),                # w2
                weight_spec((1, HIDDEN_2)),                       # b2
                weight_spec((1, HIDDEN_2)),                       # w3 (row form)
                pl.BlockSpec(memory_space=pltpu.MemorySpace.SMEM),  # b3 scalar
            ],
            out_specs=pl.BlockSpec((1, tb), lambda i: (0, i)),    # lane-dense row
        ),
        compiler_params=pltpu.CompilerParams(
            dimension_semantics=("parallel",)),
        cost_estimate=pl.CostEstimate(flops=flops, transcendentals=0,
                                      bytes_accessed=bytes_accessed),
    )(
        xa_bf,
        kparams["w1"], kparams["b1"],
        kparams["w2"], kparams["b2"],
        kparams["w3"], kparams["b3"],
    )
    return out_row[0, :B].reshape(B, 1)


def init_params(key, inputs, actions):
    """Deterministic init matching nn.Linear's U(-1/sqrt(fan_in), 1/sqrt(fan_in)).

    Weights stored as (fan_in, fan_out) so forward is x @ W + b (== torch x @ W.T).
    """
    f_in = inputs + actions
    k1, k2, k3, k4, k5, k6 = jax.random.split(key, 6)

    def lin(kw, kb, fan_in, fan_out):
        bound = 1.0 / jnp.sqrt(jnp.float32(fan_in))
        w = jax.random.uniform(kw, (fan_in, fan_out), jnp.float32, -bound, bound)
        b = jax.random.uniform(kb, (1, fan_out), jnp.float32, -bound, bound)
        return w, b

    w1, b1 = lin(k1, k2, f_in, HIDDEN_1)
    w2, b2 = lin(k3, k4, HIDDEN_1, HIDDEN_2)
    w3, b3 = lin(k5, k6, HIDDEN_2, 1)
    return {"w1": w1, "b1": b1, "w2": w2, "b2": b2, "w3": w3, "b3": b3}


def prepare_params(params):
    """Cast matmul weights to bf16 (single unsplit w1), keep biases f32."""
    # TODO(synk): bf16 weights give ~1e-3 relative error vs. a pure-f32 torch
    # critic; keep f32 weights if exact target-network parity is required.
    return {
        "w1": params["w1"].astype(jnp.bfloat16),                      # (feat, 512)
        "b1": params["b1"].astype(jnp.float32),                       # (1, 512)
        "w2": params["w2"].astype(jnp.bfloat16),                      # (512, 256)
        "b2": params["b2"].astype(jnp.float32),                       # (1, 256)
        "w3": params["w3"].reshape(1, HIDDEN_2).astype(jnp.bfloat16),  # (1, 256)
        "b3": params["b3"].reshape(1, 1).astype(jnp.float32),          # (1, 1) SMEM
    }


if __name__ == "__main__":
    # BipedalWalker-like sizes: 24-dim state, 4 actions; small batch.
    INPUTS, ACTIONS, BATCH = 24, 4, 8

    key = jax.random.PRNGKey(0)
    kp, kx, ka = jax.random.split(key, 3)
    params = init_params(kp, INPUTS, ACTIONS)
    kparams = prepare_params(params)

    x = jax.random.normal(kx, (BATCH, INPUTS), jnp.float32)
    a = jax.random.normal(ka, (ACTIONS, BATCH, 1), jnp.float32)  # a[i] is (B, 1)

    out = q_forward(x, a, kparams)
    jax.block_until_ready(out)

    # Pure-JAX reference of the same math at the same (bf16 operand / f32 acc)
    # precision, to check the kernel exactly.
    hp = jax.lax.Precision.HIGHEST
    bf = lambda t: t.astype(jnp.bfloat16).astype(jnp.float32)
    xa = jnp.concatenate([x] + [a[i] for i in range(ACTIONS)], axis=1)
    h1 = jnp.maximum(jnp.dot(bf(xa), bf(params["w1"]), precision=hp) + params["b1"], 0.0)
    h2 = jnp.maximum(jnp.dot(bf(h1), bf(params["w2"]), precision=hp) + params["b2"], 0.0)
    ref = jnp.dot(bf(h2), bf(params["w3"]), precision=hp) + params["b3"]

    assert out.shape == (BATCH, 1)
    assert jnp.allclose(out, ref, atol=2e-3, rtol=2e-3), float(jnp.max(jnp.abs(out - ref)))

    print("KERNEL_OK")
</pallas_src>

<mosaic_0001>
module attributes {stable_mosaic.version = 11 : i64} {
  func.func @q_mlp_kernel(%arg0: i32, %arg1: memref<16x28xbf16, #tpu.memory_space<vmem>>, %arg2: memref<28x512xbf16, #tpu.memory_space<vmem>>, %arg3: memref<1x512xf32, #tpu.memory_space<vmem>>, %arg4: memref<512x256xbf16, #tpu.memory_space<vmem>>, %arg5: memref<1x256xf32, #tpu.memory_space<vmem>>, %arg6: memref<1x256xbf16, #tpu.memory_space<vmem>>, %arg7: memref<1x1xf32, #tpu.memory_space<smem>>, %arg8: memref<1x16xf32, #tpu.memory_space<vmem>>) attributes {dimension_semantics = [#tpu.dimension_semantics<parallel>], iteration_bounds = array<i64: 1>, scalar_prefetch = 0 : i64, scratch_operands = 0 : i64, tpu.core_type = #tpu.core_type<tc>, window_params = [{transform_indices = @transform_0, window_bounds = array<i64: 16, 28>}, {pipeline_mode = #tpu.pipeline_mode<synchronous>, transform_indices = @transform_1, window_bounds = array<i64: 28, 512>}, {pipeline_mode = #tpu.pipeline_mode<synchronous>, transform_indices = @transform_2, window_bounds = array<i64: 1, 512>}, {pipeline_mode = #tpu.pipeline_mode<synchronous>, transform_indices = @transform_3, window_bounds = array<i64: 512, 256>}, {pipeline_mode = #tpu.pipeline_mode<synchronous>, transform_indices = @transform_4, window_bounds = array<i64: 1, 256>}, {pipeline_mode = #tpu.pipeline_mode<synchronous>, transform_indices = @transform_5, window_bounds = array<i64: 1, 256>}, {transform_indices = @transform_6, window_bounds = array<i64: 1, 1>}, {transform_indices = @transform_7, window_bounds = array<i64: 1, 16>}]} {
    %c0 = arith.constant 0 : index
    %c0_0 = arith.constant 0 : index
    %0 = vector.load %arg1[%c0, %c0_0] : memref<16x28xbf16, #tpu.memory_space<vmem>>, vector<16x28xbf16>
    %c0_1 = arith.constant 0 : index
    %c0_2 = arith.constant 0 : index
    %1 = vector.load %arg2[%c0_1, %c0_2] : memref<28x512xbf16, #tpu.memory_space<vmem>>, vector<28x512xbf16>
    %cst = arith.constant dense<0.000000e+00> : vector<16x512xf32>
    %2 = tpu.matmul %0, %1, %cst {dimension_numbers = #tpu.dot_dimension_numbers<[1], [0], [0], [1], [0, 0, 1, 1], [], []>} : vector<16x28xbf16>, vector<28x512xbf16>, vector<16x512xf32> -> vector<16x512xf32>
    %c0_3 = arith.constant 0 : index
    %c0_4 = arith.constant 0 : index
    %3 = vector.load %arg3[%c0_3, %c0_4] : memref<1x512xf32, #tpu.memory_space<vmem>>, vector<1x512xf32>
    %4 = vector.broadcast %3 : vector<1x512xf32> to vector<16x512xf32>
    %5 = arith.addf %2, %4 : vector<16x512xf32>
    %cst_5 = arith.constant 0.000000e+00 : f32
    %6 = vector.broadcast %cst_5 : f32 to vector<16x512xf32>
    %7 = arith.maximumf %5, %6 : vector<16x512xf32>
    %8 = arith.truncf %7 : vector<16x512xf32> to vector<16x512xbf16>
    %c0_6 = arith.constant 0 : index
    %c0_7 = arith.constant 0 : index
    %9 = vector.load %arg4[%c0_6, %c0_7] : memref<512x256xbf16, #tpu.memory_space<vmem>>, vector<512x256xbf16>
    %cst_8 = arith.constant dense<0.000000e+00> : vector<16x256xf32>
    %10 = tpu.matmul %8, %9, %cst_8 {dimension_numbers = #tpu.dot_dimension_numbers<[1], [0], [0], [1], [0, 0, 1, 1], [], []>} : vector<16x512xbf16>, vector<512x256xbf16>, vector<16x256xf32> -> vector<16x256xf32>
    %c0_9 = arith.constant 0 : index
    %c0_10 = arith.constant 0 : index
    %11 = vector.load %arg5[%c0_9, %c0_10] : memref<1x256xf32, #tpu.memory_space<vmem>>, vector<1x256xf32>
    %12 = vector.broadcast %11 : vector<1x256xf32> to vector<16x256xf32>
    %13 = arith.addf %10, %12 : vector<16x256xf32>
    %cst_11 = arith.constant 0.000000e+00 : f32
    %14 = vector.broadcast %cst_11 : f32 to vector<16x256xf32>
    %15 = arith.maximumf %13, %14 : vector<16x256xf32>
    %c0_12 = arith.constant 0 : index
    %c0_13 = arith.constant 0 : index
    %16 = vector.load %arg6[%c0_12, %c0_13] : memref<1x256xbf16, #tpu.memory_space<vmem>>, vector<1x256xbf16>
    %17 = arith.truncf %15 : vector<16x256xf32> to vector<16x256xbf16>
    %cst_14 = arith.constant dense<0.000000e+00> : vector<1x16xf32>
    %18 = tpu.matmul %16, %17, %cst_14 {dimension_numbers = #tpu.dot_dimension_numbers<[1], [1], [0], [0], [0, 0, 1, 0], [], []>} : vector<1x256xbf16>, vector<16x256xbf16>, vector<1x16xf32> -> vector<1x16xf32>
    %c0_15 = arith.constant 0 : index
    %c0_16 = arith.constant 0 : index
    %19 = memref.load %arg7[%c0_15, %c0_16] : memref<1x1xf32, #tpu.memory_space<smem>>
    %20 = vector.broadcast %19 : f32 to vector<1x16xf32>
    %21 = arith.addf %18, %20 : vector<1x16xf32>
    %c0_17 = arith.constant 0 : index
    %c0_18 = arith.constant 0 : index
    %22 = vector.load %arg8[%c0_17, %c0_18] : memref<1x16xf32, #tpu.memory_space<vmem>>, vector<1x16xf32>
    tpu.vector_store %arg8[%c0_17, %c0_18], %21 {strides = array<i32>} : memref<1x16xf32, #tpu.memory_space<vmem>>, vector<1x16xf32>,
    return
  }
  func.func @transform_0(%arg0: i32) -> (i32, i32) {
    %c0_i32 = arith.constant 0 : i32
    %c0_i32_0 = arith.constant 0 : i32
    return %arg0, %c0_i32 : i32, i32
  }
  func.func @transform_1(%arg0: i32) -> (i32, i32) {
    %c0_i32 = arith.constant 0 : i32
    %c0_i32_0 = arith.constant 0 : i32
    %c0_i32_1 = arith.constant 0 : i32
    return %c0_i32, %c0_i32_0 : i32, i32
  }
  func.func @transform_2(%arg0: i32) -> (i32, i32) {
    %c0_i32 = arith.constant 0 : i32
    %c0_i32_0 = arith.constant 0 : i32
    %c0_i32_1 = arith.constant 0 : i32
    return %c0_i32, %c0_i32_0 : i32, i32
  }
  func.func @transform_3(%arg0: i32) -> (i32, i32) {
    %c0_i32 = arith.constant 0 : i32
    %c0_i32_0 = arith.constant 0 : i32
    %c0_i32_1 = arith.constant 0 : i32
    return %c0_i32, %c0_i32_0 : i32, i32
  }
  func.func @transform_4(%arg0: i32) -> (i32, i32) {
    %c0_i32 = arith.constant 0 : i32
    %c0_i32_0 = arith.constant 0 : i32
    %c0_i32_1 = arith.constant 0 : i32
    return %c0_i32, %c0_i32_0 : i32, i32
  }
  func.func @transform_5(%arg0: i32) -> (i32, i32) {
    %c0_i32 = arith.constant 0 : i32
    %c0_i32_0 = arith.constant 0 : i32
    %c0_i32_1 = arith.constant 0 : i32
    return %c0_i32, %c0_i32_0 : i32, i32
  }
  func.func @transform_6(%arg0: i32) -> (i32, i32) {
    %c0_i32 = arith.constant 0 : i32
    %c0_i32_0 = arith.constant 0 : i32
    %c0_i32_1 = arith.constant 0 : i32
    return %c0_i32, %c0_i32_0 : i32, i32
  }
  func.func @transform_7(%arg0: i32) -> (i32, i32) {
    %c0_i32 = arith.constant 0 : i32
    %c0_i32_0 = arith.constant 0 : i32
    return %c0_i32, %arg0 : i32, i32
  }
}

</mosaic_0001>

<llo_original>
// kernel: tpu_custom_call.1
$region0: #{tpu_custom_call.1}
  #allocation0 [shape = 'u32[]', space=smem, size = 0x4, offset = 0x4, fixed_abs, tag = 'smem constant byte address 0x4 - core index']
  #allocation1 [shape = 'u32[72,128]{1,0:T(1,128)}', space=vmem, size = 0x9000, scoped, tag = 'internal scratch']
  #allocation2 [shape = 'f32[1,1]{1,0:T(1,128)S(6)}', space=smem, size = 0x200, scoped, tag = 'scoped memory for tpu_custom_call.1']
  %s0 = inlined_call_operand.hbm [shape: bf16[16,28], index: 0, kind: input, shape index: {}]
  %s1 = inlined_call_operand.hbm [shape: bf16[28,512], index: 1, kind: input, shape index: {}]
  %s2 = inlined_call_operand.hbm [shape: f32[1,512], index: 2, kind: input, shape index: {}]
  %s3 = inlined_call_operand.hbm [shape: bf16[512,256], index: 3, kind: input, shape index: {}]
  %s4 = inlined_call_operand.vmem [shape: f32[1,256], index: 4, kind: input, shape index: {}]
  %s5 = inlined_call_operand.vmem [shape: bf16[1,256], index: 5, kind: input, shape index: {}]
  %s6 = inlined_call_operand.<no memory space> [shape: f32[1,1], index: 6, kind: input, shape index: {}]
  %s7 = inlined_call_operand.hbm [shape: f32[1,16], index: 7, kind: output, shape index: {}]
  %s8 = sld [smem:[#allocation0]]
  $region54: #{tpu_custom_call.1} parent=0
    _
  %s10 = ssub.s32 1, %s8
  %s11 = scalar_select 0, %s10, %s8
  %12 = sst [smem:[#allocation2]] %s6
  $region1: #{tpu_custom_call.1} parent=0
    #allocation3 [shape = 'u8[4096]{0}', space=vmem, size = 0x1000, scoped, tag = 'input window, operand 0, single buffered']
    #allocation4 [shape = 's32[1]{0}', space=sflag, size = 0x4, scoped, tag = 'scoped memory for tpu_custom_call.1']
    #allocation5 [shape = 's32[1]{0}', space=sflag, size = 0x4, scoped, tag = 'scoped memory for tpu_custom_call.1']
    #allocation6 [shape = 'u8[32768]{0}', space=vmem, size = 0x8000, scoped, tag = 'input window, operand 1, single buffered']
    #allocation7 [shape = 's32[1]{0}', space=sflag, size = 0x4, scoped, tag = 'scoped memory for tpu_custom_call.1']
    #allocation8 [shape = 'u8[2048]{0}', space=vmem, size = 0x800, scoped, tag = 'input window, operand 2, single buffered']
    #allocation9 [shape = 'u8[262144]{0}', space=vmem, size = 0x40000, scoped, tag = 'input window, operand 3, single buffered']
    #allocation10 [shape = 's32[1]{0}', space=sflag, size = 0x4, scoped, tag = 'scoped memory for tpu_custom_call.1']
    #allocation11 [shape = 'u8[512]{0}', space=vmem, size = 0x400, scoped, tag = 'output window, operand 0, single buffered']
    %13 = vsyncpa [#allocation4], 0
    %14 = vsyncpa [#allocation7], 0
    %15 = vsyncpa [#allocation10], 0
    %16 = vsyncpa [#allocation5], 0
    // Predicated region
    $region2: #{tpu_custom_call.1} parent=1 // pred_check
      _
    $region3: #{tpu_custom_call.1} parent=1 // pred_check_branch
      %18 = sbr.rel (0) target = $region5
    $region4: #{tpu_custom_call.1} parent=1 // pred_region
      %20 = vsyncadd [#allocation4], 0
      %s21 = sshll.u32 %s0, 4
      %s22 = int_to_ptr.hbm [resolvable:$true] %s21
      %s23 = sshll.u32 [#allocation3], 4
      %s24 = int_to_ptr.vmem [resolvable:$true] %s23
      %29 = dma.hbm_to_vmem [thread:$0]  %s22, 128, %s24, [#allocation4], 64, 64, 4
    $region5: #{tpu_custom_call.1} parent=1 // pred_fallthru
      _
    // Predicated region
    $region6: #{tpu_custom_call.1} parent=1 // pred_check
      _
    $region7: #{tpu_custom_call.1} parent=1 // pred_check_branch
      %31 = sbr.rel (0) target = $region9
    $region8: #{tpu_custom_call.1} parent=1 // pred_region
      %33 = vsyncadd [#allocation7], 0
      %s34 = sshll.u32 %s1, 4
      %s35 = int_to_ptr.hbm [resolvable:$true] %s34
      %s36 = sshll.u32 [#allocation6], 4
      %s37 = int_to_ptr.vmem [resolvable:$true] %s36
      %42 = dma.hbm_to_vmem [thread:$0]  %s35, 1024, %s37, [#allocation7], 256, 256, 16
    $region9: #{tpu_custom_call.1} parent=1 // pred_fallthru
      _
    // Predicated region
    $region10: #{tpu_custom_call.1} parent=1 // pred_check
      _
    $region11: #{tpu_custom_call.1} parent=1 // pred_check_branch
      %44 = sbr.rel (0) target = $region13
    $region12: #{tpu_custom_call.1} parent=1 // pred_region
      %46 = vsyncadd [#allocation7], 0
      %s48 = sshll.u32 %s2, 4
      %s49 = int_to_ptr.hbm [resolvable:$true] %s48
      %s50 = sshll.u32 [#allocation8], 4
      %s51 = int_to_ptr.vmem [resolvable:$true] %s50
      %53 = dma.hbm_to_vmem [thread:$0]  %s49, 64, %s51, [#allocation7]
    $region13: #{tpu_custom_call.1} parent=1 // pred_fallthru
      _
    // Predicated region
    $region14: #{tpu_custom_call.1} parent=1 // pred_check
      _
    $region15: #{tpu_custom_call.1} parent=1 // pred_check_branch
      %55 = sbr.rel (0) target = $region17
    $region16: #{tpu_custom_call.1} parent=1 // pred_region
      %57 = vsyncadd [#allocation10], 0
      %s58 = sshll.u32 %s3, 4
      %s59 = int_to_ptr.hbm [resolvable:$true] %s58
      %s60 = sshll.u32 [#allocation9], 4
      %s61 = int_to_ptr.vmem [resolvable:$true] %s60
      %66 = dma.hbm_to_vmem [thread:$0]  %s59, 8192, %s61, [#allocation10], 128, 128, 8
    $region17: #{tpu_custom_call.1} parent=1 // pred_fallthru
      _
    // Predicated region
    $region18: #{tpu_custom_call.1} parent=1 // pred_check
      _
    $region19: #{tpu_custom_call.1} parent=1 // pred_check_branch
      %68 = sbr.rel (0) target = $region21
    $region20: #{tpu_custom_call.1} parent=1 // pred_region
      _
    $region21: #{tpu_custom_call.1} parent=1 // pred_fallthru
      _
    // Predicated region
    $region22: #{tpu_custom_call.1} parent=1 // pred_check
      _
    $region23: #{tpu_custom_call.1} parent=1 // pred_check_branch
      %70 = sbr.rel (0) target = $region25
    $region24: #{tpu_custom_call.1} parent=1 // pred_region
      _
    $region25: #{tpu_custom_call.1} parent=1 // pred_fallthru
      _
    // Predicated region
    $region26: #{tpu_custom_call.1} parent=1 // pred_check
      _
    $region27: #{tpu_custom_call.1} parent=1 // pred_check_branch
      %72 = sbr.rel (0) target = $region29
    $region28: #{tpu_custom_call.1} parent=1 // pred_region
      _
    $region29: #{tpu_custom_call.1} parent=1 // pred_fallthru
      _
    // Predicated region
    $region30: #{tpu_custom_call.1} parent=1 // pred_check
      _
    $region31: #{tpu_custom_call.1} parent=1 // pred_check_branch
      %74 = sbr.rel (0) target = $region33
    $region32: #{tpu_custom_call.1} parent=1 // pred_region
      %76 = dma.done [#allocation4], 128
    $region33: #{tpu_custom_call.1} parent=1 // pred_fallthru
      _
    // Predicated region
    $region34: #{tpu_custom_call.1} parent=1 // pred_check
      _
    $region35: #{tpu_custom_call.1} parent=1 // pred_check_branch
      %78 = sbr.rel (0) target = $region37
    $region36: #{tpu_custom_call.1} parent=1 // pred_region
      %80 = dma.done [#allocation7], 1024
    $region37: #{tpu_custom_call.1} parent=1 // pred_fallthru
      _
    // Predicated region
    $region38: #{tpu_custom_call.1} parent=1 // pred_check
      _
    $region39: #{tpu_custom_call.1} parent=1 // pred_check_branch
      %82 = sbr.rel (0) target = $region41
    $region40: #{tpu_custom_call.1} parent=1 // pred_region
      %84 = dma.done [#allocation7], 64
    $region41: #{tpu_custom_call.1} parent=1 // pred_fallthru
      _
    // Predicated region
    $region42: #{tpu_custom_call.1} parent=1 // pred_check
      _
    $region43: #{tpu_custom_call.1} parent=1 // pred_check_branch
      %86 = sbr.rel (0) target = $region45
    $region44: #{tpu_custom_call.1} parent=1 // pred_region
      %88 = dma.done [#allocation10], 8192
    $region45: #{tpu_custom_call.1} parent=1 // pred_fallthru
      _
    %v90 = vld [vmem:[#allocation3] sm:$0xf]
    %v91 = vld [vmem:[#allocation3 + $0x4] sm:$0xf]
    %v92 = vld [vmem:[#allocation6] sm:$0xff]
    %v93 = vld [vmem:[#allocation6 + $0x8] sm:$0xff]
    %v94 = vld [vmem:[#allocation6 + $0x10] sm:$0xff]
    %v95 = vld [vmem:[#allocation6 + $0x18] sm:$0xff]
    %v96 = vld [vmem:[#allocation6 + $0x20] sm:$0xff]
    %v97 = vld [vmem:[#allocation6 + $0x28] sm:$0xff]
    %v98 = vld [vmem:[#allocation6 + $0x30] sm:$0x33]
    %v99 = vld [vmem:[#allocation6 + $0x38] sm:$0x33]
    %v100 = vld [vmem:[#allocation8] sm:$0xf]
    %v102 = vperm.slane %v100, 0
    %v103 = vperm.slane %v100, 1
    %v104 = vperm.slane %v100, 2
    %v105 = vperm.slane %v100, 3
    %v112 = vunpack.c.l.b16 %v90
    %v113 = vunpack.c.l.b16 %v91
    %v114 = vpack.c.b16 %v113, %v112
    %v123 = vunpack.c.l.b16 %v92
    %v124 = vunpack.c.h.b16 %v92
    %v125 = vunpack.c.l.b16 %v93
    %v126 = vunpack.c.h.b16 %v93
    %v127 = vunpack.c.l.b16 %v94
    %v128 = vunpack.c.h.b16 %v94
    %v129 = vunpack.c.l.b16 %v95
    %v130 = vunpack.c.h.b16 %v95
    %v131 = vunpack.c.l.b16 %v96
    %v132 = vunpack.c.h.b16 %v96
    %v133 = vunpack.c.l.b16 %v97
    %v134 = vunpack.c.h.b16 %v97
    %v135 = vunpack.c.l.b16 %v98
    %v136 = vunpack.c.h.b16 %v98
    %v137 = vunpack.c.l.b16 %v99
    %v138 = vunpack.c.h.b16 %v99
    %v139 = vpack.c.b16 %v127, %v123
    %v140 = vpack.c.b16 %v128, %v124
    %v141 = vpack.c.b16 %v129, %v125
    %v142 = vpack.c.b16 %v130, %v126
    %v143 = vpack.c.b16 %v135, %v131
    %v144 = vpack.c.b16 %v136, %v132
    %v145 = vpack.c.b16 %v137, %v133
    %v146 = vpack.c.b16 %v138, %v134
    %vm151 = vcmask 228352
    %v153 = vsel %vm151, %v114, 0
    %vm155 = vcmask 1045504
    %v157 = vsel %vm155, %v143, 0
    %v160 = vsel %vm155, %v144, 0
    %v163 = vsel %vm155, %v145, 0
    %v166 = vsel %vm155, %v146, 0
    %168 = vmatpush.bf16.msra.mxu0 0
    %169 = vmatpush.bf16.msra.mxu0 0
    %170 = vmatpush.bf16.msra.mxu0 0
    %171 = vmatpush.bf16.msra.mxu0 0
    %172 = vmatpush.bf16.msra.mxu0 0
    %173 = vmatpush.bf16.msra.mxu0 0
    %174 = vmatpush.bf16.msra.mxu0 %v157
    %175 = vmatpush.bf16.msra.mxu0 %v139
    %176 = vmatmul.bf16.gmra.mxu0 %v153
    %v177 = vpop.f32.mrf.mxu0
    %v178 = vadd.f32 %v102, %v177
    %v179 = vpop.f32.mrf.mxu0
    %v180 = vadd.f32 %v102, %v179
    %181 = vdwg.mxu0
    %182 = vmatpush.bf16.msra.mxu0 0
    %183 = vmatpush.bf16.msra.mxu0 0
    %184 = vmatpush.bf16.msra.mxu0 0
    %185 = vmatpush.bf16.msra.mxu0 0
    %186 = vmatpush.bf16.msra.mxu0 0
    %187 = vmatpush.bf16.msra.mxu0 0
    %188 = vmatpush.bf16.msra.mxu0 %v160
    %189 = vmatpush.bf16.msra.mxu0 %v140
    %190 = vmatmul.bf16.gmra.mxu0 %v153
    %v191 = vpop.f32.mrf.mxu0
    %v192 = vadd.f32 %v103, %v191
    %v193 = vpop.f32.mrf.mxu0
    %v194 = vadd.f32 %v103, %v193
    %195 = vdwg.mxu0
    %196 = vmatpush.bf16.msra.mxu0 0
    %197 = vmatpush.bf16.msra.mxu0 0
    %198 = vmatpush.bf16.msra.mxu0 0
    %199 = vmatpush.bf16.msra.mxu0 0
    %200 = vmatpush.bf16.msra.mxu0 0
    %201 = vmatpush.bf16.msra.mxu0 0
    %202 = vmatpush.bf16.msra.mxu0 %v163
    %203 = vmatpush.bf16.msra.mxu0 %v141
    %204 = vmatmul.bf16.gmra.mxu0 %v153
    %v205 = vpop.f32.mrf.mxu0
    %v206 = vadd.f32 %v104, %v205
    %v207 = vpop.f32.mrf.mxu0
    %v208 = vadd.f32 %v104, %v207
    %209 = vdwg.mxu0
    %210 = vmatpush.bf16.msra.mxu0 0
    %211 = vmatpush.bf16.msra.mxu0 0
    %212 = vmatpush.bf16.msra.mxu0 0
    %213 = vmatpush.bf16.msra.mxu0 0
    %214 = vmatpush.bf16.msra.mxu0 0
    %215 = vmatpush.bf16.msra.mxu0 0
    %216 = vmatpush.bf16.msra.mxu0 %v166
    %217 = vmatpush.bf16.msra.mxu0 %v142
    %218 = vmatmul.bf16.gmra.mxu0 %v153
    %v219 = vpop.f32.mrf.mxu0
    %v220 = vadd.f32 %v105, %v219
    %v221 = vpop.f32.mrf.mxu0
    %v222 = vadd.f32 %v105, %v221
    %223 = vdwg.mxu0
    %v224 = vmax.f32 %v178, 0.0
    %v225 = vmax.f32 %v192, 0.0
    %v226 = vmax.f32 %v206, 0.0
    %v227 = vmax.f32 %v220, 0.0
    %v228 = vmax.f32 %v180, 0.0
    %v229 = vmax.f32 %v194, 0.0
    %v230 = vmax.f32 %v208, 0.0
    %v231 = vmax.f32 %v222, 0.0
    %v232 = vpack.c.bf16 %v228, %v224
    %v233 = vpack.c.bf16 %v229, %v225
    %v234 = vpack.c.bf16 %v230, %v226
    %v235 = vpack.c.bf16 %v231, %v227
    %v236 = vld [vmem:[#allocation9] sm:$0xff]
    %v237 = vld [vmem:[#allocation9 + $0x8] sm:$0xff]
    %v238 = vld [vmem:[#allocation9 + $0x10] sm:$0xff]
    %v239 = vld [vmem:[#allocation9 + $0x18] sm:$0xff]
    %v240 = vld [vmem:[#allocation9 + $0x20] sm:$0xff]
    %v241 = vld [vmem:[#allocation9 + $0x28] sm:$0xff]
    %v242 = vld [vmem:[#allocation9 + $0x30] sm:$0xff]
    %v243 = vld [vmem:[#allocation9 + $0x38] sm:$0xff]
    %v244 = vld [vmem:[#allocation9 + $0x40] sm:$0xff]
    %v245 = vld [vmem:[#allocation9 + $0x48] sm:$0xff]
    %v246 = vld [vmem:[#allocation9 + $0x50] sm:$0xff]
    %v247 = vld [vmem:[#allocation9 + $0x58] sm:$0xff]
    %v248 = vld [vmem:[#allocation9 + $0x60] sm:$0xff]
    %v249 = vld [vmem:[#allocation9 + $0x68] sm:$0xff]
    %v250 = vld [vmem:[#allocation9 + $0x70] sm:$0xff]
    %v251 = vld [vmem:[#allocation9 + $0x78] sm:$0xff]
    %v252 = vld [vmem:[#allocation9 + $0x80] sm:$0xff]
    %v253 = vld [vmem:[#allocation9 + $0x88] sm:$0xff]
    %v254 = vld [vmem:[#allocation9 + $0x90] sm:$0xff]
    %v255 = vld [vmem:[#allocation9 + $0x98] sm:$0xff]
    %v256 = vld [vmem:[#allocation9 + $0xa0] sm:$0xff]
    %v257 = vld [vmem:[#allocation9 + $0xa8] sm:$0xff]
    %v258 = vld [vmem:[#allocation9 + $0xb0] sm:$0xff]
    %v259 = vld [vmem:[#allocation9 + $0xb8] sm:$0xff]
    %v260 = vld [vmem:[#allocation9 + $0xc0] sm:$0xff]
    %v261 = vld [vmem:[#allocation9 + $0xc8] sm:$0xff]
    %v262 = vld [vmem:[#allocation9 + $0xd0] sm:$0xff]
    %v263 = vld [vmem:[#allocation9 + $0xd8] sm:$0xff]
    %v264 = vld [vmem:[#allocation9 + $0xe0] sm:$0xff]
    %v265 = vld [vmem:[#allocation9 + $0xe8] sm:$0xff]
    %v266 = vld [vmem:[#allocation9 + $0xf0] sm:$0xff]
    %v267 = vld [vmem:[#allocation9 + $0xf8] sm:$0xff]
    %v268 = vld [vmem:[#allocation9 + $0x100] sm:$0xff]
    %v269 = vld [vmem:[#allocation9 + $0x108] sm:$0xff]
    %v270 = vld [vmem:[#allocation9 + $0x110] sm:$0xff]
    %v271 = vld [vmem:[#allocation9 + $0x118] sm:$0xff]
    %v272 = vld [vmem:[#allocation9 + $0x120] sm:$0xff]
    %v273 = vld [vmem:[#allocation9 + $0x128] sm:$0xff]
    %v274 = vld [vmem:[#allocation9 + $0x130] sm:$0xff]
    %v275 = vld [vmem:[#allocation9 + $0x138] sm:$0xff]
    %v276 = vld [vmem:[#allocation9 + $0x140] sm:$0xff]
    %v277 = vld [vmem:[#allocation9 + $0x148] sm:$0xff]
    %v278 = vld [vmem:[#allocation9 + $0x150] sm:$0xff]
    %v279 = vld [vmem:[#allocation9 + $0x158] sm:$0xff]
    %v280 = vld [vmem:[#allocation9 + $0x160] sm:$0xff]
    %v281 = vld [vmem:[#allocation9 + $0x168] sm:$0xff]
    %v282 = vld [vmem:[#allocation9 + $0x170] sm:$0xff]
    %v283 = vld [vmem:[#allocation9 + $0x178] sm:$0xff]
    %v284 = vld [vmem:[#allocation9 + $0x180] sm:$0xff]
    %v285 = vld [vmem:[#allocation9 + $0x188] sm:$0xff]
    %v286 = vld [vmem:[#allocation9 + $0x190] sm:$0xff]
    %v287 = vld [vmem:[#allocation9 + $0x198] sm:$0xff]
    %v288 = vld [vmem:[#allocation9 + $0x1a0] sm:$0xff]
    %v289 = vld [vmem:[#allocation9 + $0x1a8] sm:$0xff]
    %v290 = vld [vmem:[#allocation9 + $0x1b0] sm:$0xff]
    %v291 = vld [vmem:[#allocation9 + $0x1b8] sm:$0xff]
    %v292 = vld [vmem:[#allocation9 + $0x1c0] sm:$0xff]
    %v293 = vld [vmem:[#allocation9 + $0x1c8] sm:$0xff]
    %v294 = vld [vmem:[#allocation9 + $0x1d0] sm:$0xff]
    %v295 = vld [vmem:[#allocation9 + $0x1d8] sm:$0xff]
    %v296 = vld [vmem:[#allocation9 + $0x1e0] sm:$0xff]
    %v297 = vld [vmem:[#allocation9 + $0x1e8] sm:$0xff]
    %v298 = vld [vmem:[#allocation9 + $0x1f0] sm:$0xff]
    %v299 = vld [vmem:[#allocation9 + $0x1f8] sm:$0xff]
    %v300 = vld [vmem:[%s4] sm:$0x3]
    %v302 = vperm.slane %v300, 0
    %v303 = vperm.slane %v300, 1
    %v370 = vunpack.c.l.b16 %v236
    %v371 = vunpack.c.h.b16 %v236
    %v372 = vunpack.c.l.b16 %v237
    %v373 = vunpack.c.h.b16 %v237
    %v374 = vunpack.c.l.b16 %v238
    %v375 = vunpack.c.h.b16 %v238
    %v376 = vunpack.c.l.b16 %v239
    %v377 = vunpack.c.h.b16 %v239
    %v378 = vunpack.c.l.b16 %v240
    %v379 = vunpack.c.h.b16 %v240
    %v380 = vunpack.c.l.b16 %v241
    %v381 = vunpack.c.h.b16 %v241
    %v382 = vunpack.c.l.b16 %v242
    %v383 = vunpack.c.h.b16 %v242
    %v384 = vunpack.c.l.b16 %v243
    %v385 = vunpack.c.h.b16 %v243
    %v386 = vunpack.c.l.b16 %v244
    %v387 = vunpack.c.h.b16 %v244
    %v388 = vunpack.c.l.b16 %v245
    %v389 = vunpack.c.h.b16 %v245
    %v390 = vunpack.c.l.b16 %v246
    %v391 = vunpack.c.h.b16 %v246
    %v392 = vunpack.c.l.b16 %v247
    %v393 = vunpack.c.h.b16 %v247
    %v394 = vunpack.c.l.b16 %v248
    %v395 = vunpack.c.h.b16 %v248
    %v396 = vunpack.c.l.b16 %v249
    %v397 = vunpack.c.h.b16 %v249
    %v398 = vunpack.c.l.b16 %v250
    %v399 = vunpack.c.h.b16 %v250
    %v400 = vunpack.c.l.b16 %v251
    %v401 = vunpack.c.h.b16 %v251
    %v402 = vunpack.c.l.b16 %v252
    %v403 = vunpack.c.h.b16 %v252
    %v404 = vunpack.c.l.b16 %v253
    %v405 = vunpack.c.h.b16 %v253
    %v406 = vunpack.c.l.b16 %v254
    %v407 = vunpack.c.h.b16 %v254
    %v408 = vunpack.c.l.b16 %v255
    %v409 = vunpack.c.h.b16 %v255
    %v410 = vunpack.c.l.b16 %v256
    %v411 = vunpack.c.h.b16 %v256
    %v412 = vunpack.c.l.b16 %v257
    %v413 = vunpack.c.h.b16 %v257
    %v414 = vunpack.c.l.b16 %v258
    %v415 = vunpack.c.h.b16 %v258
    %v416 = vunpack.c.l.b16 %v259
    %v417 = vunpack.c.h.b16 %v259
    %v418 = vunpack.c.l.b16 %v260
    %v419 = vunpack.c.h.b16 %v260
    %v420 = vunpack.c.l.b16 %v261
    %v421 = vunpack.c.h.b16 %v261
    %v422 = vunpack.c.l.b16 %v262
    %v423 = vunpack.c.h.b16 %v262
    %v424 = vunpack.c.l.b16 %v263
    %v425 = vunpack.c.h.b16 %v263
    %v426 = vunpack.c.l.b16 %v264
    %v427 = vunpack.c.h.b16 %v264
    %v428 = vunpack.c.l.b16 %v265
    %v429 = vunpack.c.h.b16 %v265
    %v430 = vunpack.c.l.b16 %v266
    %v431 = vunpack.c.h.b16 %v266
    %v432 = vunpack.c.l.b16 %v267
    %v433 = vunpack.c.h.b16 %v267
    %v434 = vunpack.c.l.b16 %v268
    %v435 = vunpack.c.h.b16 %v268
    %v436 = vunpack.c.l.b16 %v269
    %v437 = vunpack.c.h.b16 %v269
    %v438 = vunpack.c.l.b16 %v270
    %v439 = vunpack.c.h.b16 %v270
    %v440 = vunpack.c.l.b16 %v271
    %v441 = vunpack.c.h.b16 %v271
    %v442 = vunpack.c.l.b16 %v272
    %v443 = vunpack.c.h.b16 %v272
    %v444 = vunpack.c.l.b16 %v273
    %v445 = vunpack.c.h.b16 %v273
    %v446 = vunpack.c.l.b16 %v274
    %v447 = vunpack.c.h.b16 %v274
    %v448 = vunpack.c.l.b16 %v275
    %v449 = vunpack.c.h.b16 %v275
    %v450 = vunpack.c.l.b16 %v276
    %v451 = vunpack.c.h.b16 %v276
    %v452 = vunpack.c.l.b16 %v277
    %v453 = vunpack.c.h.b16 %v277
    %v454 = vunpack.c.l.b16 %v278
    %v455 = vunpack.c.h.b16 %v278
    %v456 = vunpack.c.l.b16 %v279
    %v457 = vunpack.c.h.b16 %v279
    %v458 = vunpack.c.l.b16 %v280
    %v459 = vunpack.c.h.b16 %v280
    %v460 = vunpack.c.l.b16 %v281
    %v461 = vunpack.c.h.b16 %v281
    %v462 = vunpack.c.l.b16 %v282
    %v463 = vunpack.c.h.b16 %v282
    %v464 = vunpack.c.l.b16 %v283
    %v465 = vunpack.c.h.b16 %v283
    %v466 = vunpack.c.l.b16 %v284
    %v467 = vunpack.c.h.b16 %v284
    %v468 = vunpack.c.l.b16 %v285
    %v469 = vunpack.c.h.b16 %v285
    %v470 = vunpack.c.l.b16 %v286
    %v471 = vunpack.c.h.b16 %v286
    %v472 = vunpack.c.l.b16 %v287
    %v473 = vunpack.c.h.b16 %v287
    %v474 = vunpack.c.l.b16 %v288
    %v475 = vunpack.c.h.b16 %v288
    %v476 = vunpack.c.l.b16 %v289
    %v477 = vunpack.c.h.b16 %v289
    %v478 = vunpack.c.l.b16 %v290
    %v479 = vunpack.c.h.b16 %v290
    %v480 = vunpack.c.l.b16 %v291
    %v481 = vunpack.c.h.b16 %v291
    %v482 = vunpack.c.l.b16 %v292
    %v483 = vunpack.c.h.b16 %v292
    %v484 = vunpack.c.l.b16 %v293
    %v485 = vunpack.c.h.b16 %v293
    %v486 = vunpack.c.l.b16 %v294
    %v487 = vunpack.c.h.b16 %v294
    %v488 = vunpack.c.l.b16 %v295
    %v489 = vunpack.c.h.b16 %v295
    %v490 = vunpack.c.l.b16 %v296
    %v491 = vunpack.c.h.b16 %v296
    %v492 = vunpack.c.l.b16 %v297
    %v493 = vunpack.c.h.b16 %v297
    %v494 = vunpack.c.l.b16 %v298
    %v495 = vunpack.c.h.b16 %v298
    %v496 = vunpack.c.l.b16 %v299
    %v497 = vunpack.c.h.b16 %v299
    %v498 = vpack.c.b16 %v372, %v370
    %v499 = vpack.c.b16 %v373, %v371
    %v500 = vpack.c.b16 %v376, %v374
    %v501 = vpack.c.b16 %v377, %v375
    %v502 = vpack.c.b16 %v380, %v378
    %v503 = vpack.c.b16 %v381, %v379
    %v504 = vpack.c.b16 %v384, %v382
    %v505 = vpack.c.b16 %v385, %v383
    %v506 = vpack.c.b16 %v388, %v386
    %v507 = vpack.c.b16 %v389, %v387
    %v508 = vpack.c.b16 %v392, %v390
    %v509 = vpack.c.b16 %v393, %v391
    %v510 = vpack.c.b16 %v396, %v394
    %v511 = vpack.c.b16 %v397, %v395
    %v512 = vpack.c.b16 %v400, %v398
    %v513 = vpack.c.b16 %v401, %v399
    %v514 = vpack.c.b16 %v404, %v402
    %v515 = vpack.c.b16 %v405, %v403
    %v516 = vpack.c.b16 %v408, %v406
    %v517 = vpack.c.b16 %v409, %v407
    %v518 = vpack.c.b16 %v412, %v410
    %v519 = vpack.c.b16 %v413, %v411
    %v520 = vpack.c.b16 %v416, %v414
    %v521 = vpack.c.b16 %v417, %v415
    %v522 = vpack.c.b16 %v420, %v418
    %v523 = vpack.c.b16 %v421, %v419
    %v524 = vpack.c.b16 %v424, %v422
    %v525 = vpack.c.b16 %v425, %v423
    %v526 = vpack.c.b16 %v428, %v426
    %v527 = vpack.c.b16 %v429, %v427
    %v528 = vpack.c.b16 %v432, %v430
    %v529 = vpack.c.b16 %v433, %v431
    %v530 = vpack.c.b16 %v436, %v434
    %v531 = vpack.c.b16 %v437, %v435
    %v532 = vpack.c.b16 %v440, %v438
    %v533 = vpack.c.b16 %v441, %v439
    %v534 = vpack.c.b16 %v444, %v442
    %v535 = vpack.c.b16 %v445, %v443
    %v536 = vpack.c.b16 %v448, %v446
    %v537 = vpack.c.b16 %v449, %v447
    %v538 = vpack.c.b16 %v452, %v450
    %v539 = vpack.c.b16 %v453, %v451
    %v540 = vpack.c.b16 %v456, %v454
    %v541 = vpack.c.b16 %v457, %v455
    %v542 = vpack.c.b16 %v460, %v458
    %v543 = vpack.c.b16 %v461, %v459
    %v544 = vpack.c.b16 %v464, %v462
    %v545 = vpack.c.b16 %v465, %v463
    %v546 = vpack.c.b16 %v468, %v466
    %v547 = vpack.c.b16 %v469, %v467
    %v548 = vpack.c.b16 %v472, %v470
    %v549 = vpack.c.b16 %v473, %v471
    %v550 = vpack.c.b16 %v476, %v474
    %v551 = vpack.c.b16 %v477, %v475
    %v552 = vpack.c.b16 %v480, %v478
    %v553 = vpack.c.b16 %v481, %v479
    %v554 = vpack.c.b16 %v484, %v482
    %v555 = vpack.c.b16 %v485, %v483
    %v556 = vpack.c.b16 %v488, %v486
    %v557 = vpack.c.b16 %v489, %v487
    %v558 = vpack.c.b16 %v492, %v490
    %v559 = vpack.c.b16 %v493, %v491
    %v560 = vpack.c.b16 %v496, %v494
    %v561 = vpack.c.b16 %v497, %v495
    %626 = vmatpush.bf16.msra.mxu0 %v512
    %627 = vmatpush.bf16.msra.mxu0 %v510
    %628 = vmatpush.bf16.msra.mxu0 %v508
    %629 = vmatpush.bf16.msra.mxu0 %v506
    %630 = vmatpush.bf16.msra.mxu0 %v504
    %631 = vmatpush.bf16.msra.mxu0 %v502
    %632 = vmatpush.bf16.msra.mxu0 %v500
    %633 = vmatpush.bf16.msra.mxu0 %v498
    %634 = vmatmul.bf16.gmra.mxu0 %v232
    %v635 = vpop.f32.mrf.mxu0
    %v636 = vadd.f32 %v302, %v635
    %v637 = vpop.f32.mrf.mxu0
    %v638 = vadd.f32 %v302, %v637
    %639 = vdwg.mxu0
    %640 = vmatpush.bf16.msra.mxu0 %v528
    %641 = vmatpush.bf16.msra.mxu0 %v526
    %642 = vmatpush.bf16.msra.mxu0 %v524
    %643 = vmatpush.bf16.msra.mxu0 %v522
    %644 = vmatpush.bf16.msra.mxu0 %v520
    %645 = vmatpush.bf16.msra.mxu0 %v518
    %646 = vmatpush.bf16.msra.mxu0 %v516
    %647 = vmatpush.bf16.msra.mxu0 %v514
    %648 = vmatmul.bf16.gmra.mxu0 %v233
    %v649 = vpop.f32.mrf.mxu0
    %v650 = vadd.f32 %v636, %v649
    %v651 = vpop.f32.mrf.mxu0
    %v652 = vadd.f32 %v638, %v651
    %653 = vdwg.mxu0
    %654 = vmatpush.bf16.msra.mxu0 %v544
    %655 = vmatpush.bf16.msra.mxu0 %v542
    %656 = vmatpush.bf16.msra.mxu0 %v540
    %657 = vmatpush.bf16.msra.mxu0 %v538
    %658 = vmatpush.bf16.msra.mxu0 %v536
    %659 = vmatpush.bf16.msra.mxu0 %v534
    %660 = vmatpush.bf16.msra.mxu0 %v532
    %661 = vmatpush.bf16.msra.mxu0 %v530
    %662 = vmatmul.bf16.gmra.mxu0 %v234
    %v663 = vpop.f32.mrf.mxu0
    %v664 = vadd.f32 %v650, %v663
    %v665 = vpop.f32.mrf.mxu0
    %v666 = vadd.f32 %v652, %v665
    %667 = vdwg.mxu0
    %668 = vmatpush.bf16.msra.mxu0 %v560
    %669 = vmatpush.bf16.msra.mxu0 %v558
    %670 = vmatpush.bf16.msra.mxu0 %v556
    %671 = vmatpush.bf16.msra.mxu0 %v554
    %672 = vmatpush.bf16.msra.mxu0 %v552
    %673 = vmatpush.bf16.msra.mxu0 %v550
    %674 = vmatpush.bf16.msra.mxu0 %v548
    %675 = vmatpush.bf16.msra.mxu0 %v546
    %676 = vmatmul.bf16.gmra.mxu0 %v235
    %v677 = vpop.f32.mrf.mxu0
    %v678 = vadd.f32 %v664, %v677
    %v679 = vpop.f32.mrf.mxu0
    %v680 = vadd.f32 %v666, %v679
    %681 = vdwg.mxu0
    %682 = vmatpush.bf16.msra.mxu0 %v513
    %683 = vmatpush.bf16.msra.mxu0 %v511
    %684 = vmatpush.bf16.msra.mxu0 %v509
    %685 = vmatpush.bf16.msra.mxu0 %v507
    %686 = vmatpush.bf16.msra.mxu0 %v505
    %687 = vmatpush.bf16.msra.mxu0 %v503
    %688 = vmatpush.bf16.msra.mxu0 %v501
    %689 = vmatpush.bf16.msra.mxu0 %v499
    %690 = vmatmul.bf16.gmra.mxu0 %v232
    %v691 = vpop.f32.mrf.mxu0
    %v692 = vadd.f32 %v303, %v691
    %v693 = vpop.f32.mrf.mxu0
    %v694 = vadd.f32 %v303, %v693
    %695 = vdwg.mxu0
    %696 = vmatpush.bf16.msra.mxu0 %v529
    %697 = vmatpush.bf16.msra.mxu0 %v527
    %698 = vmatpush.bf16.msra.mxu0 %v525
    %699 = vmatpush.bf16.msra.mxu0 %v523
    %700 = vmatpush.bf16.msra.mxu0 %v521
    %701 = vmatpush.bf16.msra.mxu0 %v519
    %702 = vmatpush.bf16.msra.mxu0 %v517
    %703 = vmatpush.bf16.msra.mxu0 %v515
    %704 = vmatmul.bf16.gmra.mxu0 %v233
    %v705 = vpop.f32.mrf.mxu0
    %v706 = vadd.f32 %v692, %v705
    %v707 = vpop.f32.mrf.mxu0
    %v708 = vadd.f32 %v694, %v707
    %709 = vdwg.mxu0
    %710 = vmatpush.bf16.msra.mxu0 %v545
    %711 = vmatpush.bf16.msra.mxu0 %v543
    %712 = vmatpush.bf16.msra.mxu0 %v541
    %713 = vmatpush.bf16.msra.mxu0 %v539
    %714 = vmatpush.bf16.msra.mxu0 %v537
    %715 = vmatpush.bf16.msra.mxu0 %v535
    %716 = vmatpush.bf16.msra.mxu0 %v533
    %717 = vmatpush.bf16.msra.mxu0 %v531
    %718 = vmatmul.bf16.gmra.mxu0 %v234
    %v719 = vpop.f32.mrf.mxu0
    %v720 = vadd.f32 %v706, %v719
    %v721 = vpop.f32.mrf.mxu0
    %v722 = vadd.f32 %v708, %v721
    %723 = vdwg.mxu0
    %724 = vmatpush.bf16.msra.mxu0 %v561
    %725 = vmatpush.bf16.msra.mxu0 %v559
    %726 = vmatpush.bf16.msra.mxu0 %v557
    %727 = vmatpush.bf16.msra.mxu0 %v555
    %728 = vmatpush.bf16.msra.mxu0 %v553
    %729 = vmatpush.bf16.msra.mxu0 %v551
    %730 = vmatpush.bf16.msra.mxu0 %v549
    %731 = vmatpush.bf16.msra.mxu0 %v547
    %732 = vmatmul.bf16.gmra.mxu0 %v235
    %v733 = vpop.f32.mrf.mxu0
    %v734 = vadd.f32 %v720, %v733
    %v735 = vpop.f32.mrf.mxu0
    %v736 = vadd.f32 %v722, %v735
    %737 = vdwg.mxu0
    %v738 = vmax.f32 %v678, 0.0
    %v739 = vmax.f32 %v734, 0.0
    %v740 = vmax.f32 %v680, 0.0
    %v741 = vmax.f32 %v736, 0.0
    %v742 = vld [vmem:[%s5] sm:$0x3]
    %v743 = vpack.c.bf16 %v740, %v738
    %v744 = vpack.c.bf16 %v741, %v739
    %s745 = sld [smem:[#allocation2]]
    %v746 = vstv %s745
    %748 = vst [vmem:[#allocation1] ss:$9 sm:$0xff] %v742
    %v749 = vld [vmem:[#allocation1] sm:$0xff]
    %v750 = vld [vmem:[#allocation1 + $0x9] sm:$0xff]
    %753 = vmatpush.bf16.xpose.msra.mxu0 0
    %754 = vmatpush.bf16.xpose.msra.mxu0 0
    %755 = vmatpush.bf16.xpose.msra.mxu0 0
    %756 = vmatpush.bf16.xpose.msra.mxu0 0
    %757 = vmatpush.bf16.xpose.msra.mxu0 0
    %758 = vmatpush.bf16.xpose.msra.mxu0 0
    %759 = vmatpush.bf16.xpose.msra.mxu0 0
    %760 = vmatpush.bf16.xpose.msra.mxu0 %v743
    %761 = vmatmul.bf16.gmra.mxu0 %v749
    %v762 = vpop.f32.mrf.mxu0
    %v763 = vadd.f32 %v746, %v762
    %v764 = vpop.f32.mrf.mxu0
    %765 = vdwg.mxu0
    %766 = vmatpush.bf16.xpose.msra.mxu0 0
    %767 = vmatpush.bf16.xpose.msra.mxu0 0
    %768 = vmatpush.bf16.xpose.msra.mxu0 0
    %769 = vmatpush.bf16.xpose.msra.mxu0 0
    %770 = vmatpush.bf16.xpose.msra.mxu0 0
    %771 = vmatpush.bf16.xpose.msra.mxu0 0
    %772 = vmatpush.bf16.xpose.msra.mxu0 0
    %773 = vmatpush.bf16.xpose.msra.mxu0 %v744
    %774 = vmatmul.bf16.gmra.mxu0 %v750
    %v775 = vpop.f32.mrf.mxu0
    %v776 = vadd.f32 %v763, %v775
    %v777 = vpop.f32.mrf.mxu0
    %778 = vdwg.mxu0
    %vm779 = vcmask 122880
    %780 = vst.msk [vmem:[#allocation11] sm:$0x1] %vm779, %v776
    // Predicated region
    $region46: #{tpu_custom_call.1} parent=1 // pred_check
      _
    $region47: #{tpu_custom_call.1} parent=1 // pred_check_branch
      %782 = sbr.rel (0) target = $region49
    $region48: #{tpu_custom_call.1} parent=1 // pred_region
      %784 = vsyncadd [#allocation5], 0
      %s786 = sshll.u32 [#allocation11], 4
      %s787 = int_to_ptr.vmem [resolvable:$true] %s786
      %s788 = sshll.u32 %s7, 4
      %s789 = int_to_ptr.hbm [resolvable:$true] %s788
      %791 = dma.vmem_to_hbm [thread:$0]  %s787, 16, %s789, [#allocation5]
    $region49: #{tpu_custom_call.1} parent=1 // pred_fallthru
      _
    // Predicated region
    $region50: #{tpu_custom_call.1} parent=1 // pred_check
      _
    $region51: #{tpu_custom_call.1} parent=1 // pred_check_branch
      %793 = sbr.rel (0) target = $region53
    $region52: #{tpu_custom_call.1} parent=1 // pred_region
      %795 = dma.done [#allocation5], 16
    $region53: #{tpu_custom_call.1} parent=1 // pred_fallthru
      _
    %796 = vsyncpa [#allocation4], 1
    %797 = vsyncpa [#allocation7], 1
    %798 = vsyncpa [#allocation10], 1
    %799 = vsyncpa [#allocation5], 1

</llo_original>
